<compile_context>
chip_gen: v6e
topology: v6e:2x2x1
jax: 0.10.0
libtpu: 0.0.40
codegen_flags: <defaults>
</compile_context>

<pallas_src>
import functools

import jax
import jax.numpy as jnp
from jax.experimental import pallas as pl
from jax.experimental.pallas import tpu as pltpu


def _proj_kernel(x_ref, w_ref, b_ref, o_ref, *, nb):
    # x_ref: (nb, Cin, thw)   w_ref: (Cout, Cin)   b_ref: (Cout, 1) f32
    # o_ref: (nb, Cout, thw)
    w = w_ref[...]
    bias = b_ref[...]                       # hoisted: broadcast once, not per i
    for i in range(nb):                     # small static unroll (nb <= 32)
        y = jnp.dot(w, x_ref[i], preferred_element_type=jnp.float32)
        o_ref[i] = (y + bias).astype(o_ref.dtype)


def _choose_tiles(n, hw, cin, cout, itemsize, block_budget=6 << 20, nb_max=32):
    """Pick (nb, thw): images per block and the H*W (lane-axis) tile."""
    # Lane tile: multiple of 128 (or the full axis when it cannot be).
    if hw % 128 == 0:
        thw = hw
        while (thw > 1024 and (thw // 2) % 128 == 0
               and (cin + cout) * thw * itemsize > block_budget):
            thw //= 2
    elif hw > 512:
        thw = 512                           # ragged last tile is masked
    else:
        thw = hw                            # must equal the full dim

    # Images per block: amortize the ~0.35us fixed per-grid-step overhead.
    per_img = (cin + cout) * thw * itemsize
    nb_cap = max(1, min(nb_max, block_budget // max(per_img, 1)))
    nb = 1
    for d in range(1, min(n, nb_cap) + 1):  # largest divisor of n under the cap
        if n % d == 0:
            nb = d

    # Keep at least 2 grid steps when possible (v7x has 2 TensorCores).
    if n >= 2 and (n // nb) * pl.cdiv(hw, thw) < 2:
        nb_half = 1
        for d in range(1, n // 2 + 1):
            if n % d == 0:
                nb_half = d
        nb = nb_half
    return nb, thw


@jax.jit
def projection_forward(x, w, b):
    """1x1-conv projection.

    x: (B, T, Cin, H, W) or (B, Cin, H, W)   (PyTorch channels-first layout)
    w: (Cout, Cin) or (Cout, Cin, 1, 1)      (PyTorch Conv2d weight)
    b: (Cout,)
    returns same leading dims with Cin -> Cout, dtype follows x.dtype.
    """
    single = (x.ndim == 4)
    lead = x.shape[:1] if single else x.shape[:2]
    if w.ndim == 4:                                   # (Cout, Cin, 1, 1) -> 2D
        w = w.reshape(w.shape[0], w.shape[1])
    Cin, H, W = x.shape[-3:]
    Cout = w.shape[0]
    N = 1
    for d in lead:
        N *= d
    hw = H * W

    nb, thw = _choose_tiles(N, hw, Cin, Cout, x.dtype.itemsize)

    x2 = x.reshape(N, Cin, hw)                        # free reshape, no transpose
    w2 = w.astype(x.dtype)                            # native MXU path for bf16
    b2 = b.astype(jnp.float32).reshape(Cout, 1)       # f32 bias add, lane-broadcast

    grid = (N // nb, pl.cdiv(hw, thw))

    out = pl.pallas_call(
        functools.partial(_proj_kernel, nb=nb),
        out_shape=jax.ShapeDtypeStruct((N, Cout, hw), x.dtype),
        grid=grid,
        in_specs=[
            pl.BlockSpec((nb, Cin, thw), lambda n, j: (n, 0, j)),
            pl.BlockSpec((Cout, Cin), lambda n, j: (0, 0)),   # VMEM-resident
            pl.BlockSpec((Cout, 1), lambda n, j: (0, 0)),     # VMEM-resident
        ],
        out_specs=pl.BlockSpec((nb, Cout, thw), lambda n, j: (n, 0, j)),
        compiler_params=pltpu.CompilerParams(
            dimension_semantics=("parallel", "parallel"),
            vmem_limit_bytes=32 * 1024 * 1024),
    )(x2, w2, b2)

    return out.reshape(lead + (Cout, H, W))


if __name__ == "__main__":
    B, T, Cin, Cout, H, W = 2, 4, 16, 32, 16, 16

    key = jax.random.PRNGKey(0)
    kx, kw, kb = jax.random.split(key, 3)
    x = jax.random.normal(kx, (B, T, Cin, H, W), jnp.float32)
    w = 0.1 * jax.random.normal(kw, (Cout, Cin), jnp.float32)
    b = 0.1 * jax.random.normal(kb, (Cout,), jnp.float32)

    # reference: plain-JAX 1x1 conv (matmul over the channel axis)
    ref = jnp.einsum("oc,btchw->btohw", w, x) + b[None, None, :, None, None]

    # time-series path (x.ndim == 5)
    out = jax.block_until_ready(projection_forward(x, w, b))
    assert out.shape == (B, T, Cout, H, W), out.shape
    assert out.dtype == x.dtype
    err = float(jnp.max(jnp.abs(out - ref)))
    assert jnp.allclose(out, ref, atol=1e-4, rtol=1e-4), err

    # single-frame path (x.ndim == 4)
    out1 = jax.block_until_ready(projection_forward(x[:, 0], w, b))
    assert out1.shape == (B, Cout, H, W), out1.shape
    assert jnp.allclose(out1, ref[:, 0], atol=1e-4, rtol=1e-4)

    # bf16 path: output follows input dtype; f32 accumulation inside the dot.
    xb = x.astype(jnp.bfloat16)
    outb = jax.block_until_ready(projection_forward(xb, w, b))
    assert outb.dtype == jnp.bfloat16 and outb.shape == ref.shape
    assert jnp.allclose(outb.astype(jnp.float32), ref, atol=1e-1, rtol=1e-1)

    assert bool(jnp.all(jnp.isfinite(out)))
    print("KERNEL_OK")
</pallas_src>

<mosaic_0001>
module attributes {stable_mosaic.version = 11 : i64} {
  func.func @_proj_kernel(%arg0: i32, %arg1: i32, %arg2: memref<4x16x256xf32, #tpu.memory_space<vmem>>, %arg3: memref<32x16xf32, #tpu.memory_space<vmem>>, %arg4: memref<32x1xf32, #tpu.memory_space<vmem>>, %arg5: memref<4x32x256xf32, #tpu.memory_space<vmem>>) attributes {dimension_semantics = [#tpu.dimension_semantics<parallel>, #tpu.dimension_semantics<parallel>], iteration_bounds = array<i64: 2, 1>, scalar_prefetch = 0 : i64, scratch_operands = 0 : i64, tpu.core_type = #tpu.core_type<tc>, window_params = [{transform_indices = @transform_0, window_bounds = array<i64: 4, 16, 256>}, {pipeline_mode = #tpu.pipeline_mode<synchronous>, transform_indices = @transform_1, window_bounds = array<i64: 32, 16>}, {pipeline_mode = #tpu.pipeline_mode<synchronous>, transform_indices = @transform_2, window_bounds = array<i64: 32, 1>}, {transform_indices = @transform_3, window_bounds = array<i64: 4, 32, 256>}]} {
    %c0 = arith.constant 0 : index
    %c0_0 = arith.constant 0 : index
    %0 = vector.load %arg3[%c0, %c0_0] : memref<32x16xf32, #tpu.memory_space<vmem>>, vector<32x16xf32>
    %c0_1 = arith.constant 0 : index
    %c0_2 = arith.constant 0 : index
    %1 = vector.load %arg4[%c0_1, %c0_2] : memref<32x1xf32, #tpu.memory_space<vmem>>, vector<32x1xf32>
    %c0_3 = arith.constant 0 : index
    %c0_4 = arith.constant 0 : index
    %c0_5 = arith.constant 0 : index
    %2 = vector.load %arg2[%c0_3, %c0_4, %c0_5] : memref<4x16x256xf32, #tpu.memory_space<vmem>>, vector<1x16x256xf32>
    %3 = vector.shape_cast %2 : vector<1x16x256xf32> to vector<16x256xf32>
    %cst = arith.constant dense<0.000000e+00> : vector<32x256xf32>
    %4 = tpu.matmul %0, %3, %cst {dimension_numbers = #tpu.dot_dimension_numbers<[1], [0], [0], [1], [0, 0, 1, 1], [], []>} : vector<32x16xf32>, vector<16x256xf32>, vector<32x256xf32> -> vector<32x256xf32>
    %5 = vector.broadcast %1 : vector<32x1xf32> to vector<32x256xf32>
    %6 = arith.addf %4, %5 : vector<32x256xf32>
    %c0_6 = arith.constant 0 : index
    %c0_7 = arith.constant 0 : index
    %c0_8 = arith.constant 0 : index
    %7 = vector.load %arg5[%c0_6, %c0_7, %c0_8] : memref<4x32x256xf32, #tpu.memory_space<vmem>>, vector<1x32x256xf32>
    %8 = vector.shape_cast %7 : vector<1x32x256xf32> to vector<32x256xf32>
    %9 = vector.shape_cast %6 : vector<32x256xf32> to vector<1x32x256xf32>
    tpu.vector_store %arg5[%c0_6, %c0_7, %c0_8], %9 {strides = array<i32>} : memref<4x32x256xf32, #tpu.memory_space<vmem>>, vector<1x32x256xf32>,
    %c1 = arith.constant 1 : index
    %c0_9 = arith.constant 0 : index
    %c0_10 = arith.constant 0 : index
    %10 = vector.load %arg2[%c1, %c0_9, %c0_10] : memref<4x16x256xf32, #tpu.memory_space<vmem>>, vector<1x16x256xf32>
    %11 = vector.shape_cast %10 : vector<1x16x256xf32> to vector<16x256xf32>
    %cst_11 = arith.constant dense<0.000000e+00> : vector<32x256xf32>
    %12 = tpu.matmul %0, %11, %cst_11 {dimension_numbers = #tpu.dot_dimension_numbers<[1], [0], [0], [1], [0, 0, 1, 1], [], []>} : vector<32x16xf32>, vector<16x256xf32>, vector<32x256xf32> -> vector<32x256xf32>
    %13 = vector.broadcast %1 : vector<32x1xf32> to vector<32x256xf32>
    %14 = arith.addf %12, %13 : vector<32x256xf32>
    %c1_12 = arith.constant 1 : index
    %c0_13 = arith.constant 0 : index
    %c0_14 = arith.constant 0 : index
    %15 = vector.load %arg5[%c1_12, %c0_13, %c0_14] : memref<4x32x256xf32, #tpu.memory_space<vmem>>, vector<1x32x256xf32>
    %16 = vector.shape_cast %15 : vector<1x32x256xf32> to vector<32x256xf32>
    %17 = vector.shape_cast %14 : vector<32x256xf32> to vector<1x32x256xf32>
    tpu.vector_store %arg5[%c1_12, %c0_13, %c0_14], %17 {strides = array<i32>} : memref<4x32x256xf32, #tpu.memory_space<vmem>>, vector<1x32x256xf32>,
    %c2 = arith.constant 2 : index
    %c0_15 = arith.constant 0 : index
    %c0_16 = arith.constant 0 : index
    %18 = vector.load %arg2[%c2, %c0_15, %c0_16] : memref<4x16x256xf32, #tpu.memory_space<vmem>>, vector<1x16x256xf32>
    %19 = vector.shape_cast %18 : vector<1x16x256xf32> to vector<16x256xf32>
    %cst_17 = arith.constant dense<0.000000e+00> : vector<32x256xf32>
    %20 = tpu.matmul %0, %19, %cst_17 {dimension_numbers = #tpu.dot_dimension_numbers<[1], [0], [0], [1], [0, 0, 1, 1], [], []>} : vector<32x16xf32>, vector<16x256xf32>, vector<32x256xf32> -> vector<32x256xf32>
    %21 = vector.broadcast %1 : vector<32x1xf32> to vector<32x256xf32>
    %22 = arith.addf %20, %21 : vector<32x256xf32>
    %c2_18 = arith.constant 2 : index
    %c0_19 = arith.constant 0 : index
    %c0_20 = arith.constant 0 : index
    %23 = vector.load %arg5[%c2_18, %c0_19, %c0_20] : memref<4x32x256xf32, #tpu.memory_space<vmem>>, vector<1x32x256xf32>
    %24 = vector.shape_cast %23 : vector<1x32x256xf32> to vector<32x256xf32>
    %25 = vector.shape_cast %22 : vector<32x256xf32> to vector<1x32x256xf32>
    tpu.vector_store %arg5[%c2_18, %c0_19, %c0_20], %25 {strides = array<i32>} : memref<4x32x256xf32, #tpu.memory_space<vmem>>, vector<1x32x256xf32>,
    %c3 = arith.constant 3 : index
    %c0_21 = arith.constant 0 : index
    %c0_22 = arith.constant 0 : index
    %26 = vector.load %arg2[%c3, %c0_21, %c0_22] : memref<4x16x256xf32, #tpu.memory_space<vmem>>, vector<1x16x256xf32>
    %27 = vector.shape_cast %26 : vector<1x16x256xf32> to vector<16x256xf32>
    %cst_23 = arith.constant dense<0.000000e+00> : vector<32x256xf32>
    %28 = tpu.matmul %0, %27, %cst_23 {dimension_numbers = #tpu.dot_dimension_numbers<[1], [0], [0], [1], [0, 0, 1, 1], [], []>} : vector<32x16xf32>, vector<16x256xf32>, vector<32x256xf32> -> vector<32x256xf32>
    %29 = vector.broadcast %1 : vector<32x1xf32> to vector<32x256xf32>
    %30 = arith.addf %28, %29 : vector<32x256xf32>
    %c3_24 = arith.constant 3 : index
    %c0_25 = arith.constant 0 : index
    %c0_26 = arith.constant 0 : index
    %31 = vector.load %arg5[%c3_24, %c0_25, %c0_26] : memref<4x32x256xf32, #tpu.memory_space<vmem>>, vector<1x32x256xf32>
    %32 = vector.shape_cast %31 : vector<1x32x256xf32> to vector<32x256xf32>
    %33 = vector.shape_cast %30 : vector<32x256xf32> to vector<1x32x256xf32>
    tpu.vector_store %arg5[%c3_24, %c0_25, %c0_26], %33 {strides = array<i32>} : memref<4x32x256xf32, #tpu.memory_space<vmem>>, vector<1x32x256xf32>,
    return
  }
  func.func @transform_0(%arg0: i32, %arg1: i32) -> (i32, i32, i32) {
    %c0_i32 = arith.constant 0 : i32
    %c0_i32_0 = arith.constant 0 : i32
    return %arg0, %c0_i32, %arg1 : i32, i32, i32
  }
  func.func @transform_1(%arg0: i32, %arg1: i32) -> (i32, i32) {
    %c0_i32 = arith.constant 0 : i32
    %c0_i32_0 = arith.constant 0 : i32
    %c0_i32_1 = arith.constant 0 : i32
    return %c0_i32, %c0_i32_0 : i32, i32
  }
  func.func @transform_2(%arg0: i32, %arg1: i32) -> (i32, i32) {
    %c0_i32 = arith.constant 0 : i32
    %c0_i32_0 = arith.constant 0 : i32
    %c0_i32_1 = arith.constant 0 : i32
    return %c0_i32, %c0_i32_0 : i32, i32
  }
  func.func @transform_3(%arg0: i32, %arg1: i32) -> (i32, i32, i32) {
    %c0_i32 = arith.constant 0 : i32
    %c0_i32_0 = arith.constant 0 : i32
    return %arg0, %c0_i32, %arg1 : i32, i32, i32
  }
}

</mosaic_0001>

<llo_original>
// kernel: projection_forward.1
$region0: #{projection_forward.1}
  #allocation0 [shape = 'u32[]', space=smem, size = 0x4, offset = 0x4, fixed_abs, tag = 'smem constant byte address 0x4 - core index']
  #allocation1 [shape = 'u32[144,128]{1,0:T(1,128)}', space=vmem, size = 0x12000, scoped, tag = 'internal scratch']
  %s0 = inlined_call_operand.vmem [shape: f32[8,16,256], index: 0, kind: input, shape index: {}]
  %s1 = inlined_call_operand.vmem [shape: f32[32,16], index: 1, kind: input, shape index: {}]
  %s2 = inlined_call_operand.vmem [shape: f32[32,1], index: 2, kind: input, shape index: {}]
  %s3 = inlined_call_operand.vmem [shape: f32[8,32,256], index: 3, kind: output, shape index: {}]
  %s4 = sld [smem:[#allocation0]]
  $region45: #{projection_forward.1} parent=0
    _
  %s6 = ssub.s32 1, %s4
  %s7 = scalar_select 0, %s6, %s4
  loop: start=0, step=1, limit=4
  $region2: #{projection_forward.1} parent=0 // loop_pre_header
    _
  $region3: #{projection_forward.1} parent=0 // loop_header
    %s9 = sphi 0, %s13
    %p10 = scmp.ge.s32.totalorder %s9, 4
    %s16 = sphi 0, %s28
    %s17 = sphi 0, %s24
    %s18 = sphi 0, %s16
    %s19 = sphi 0, %s17
    %s20 = sphi 0, %s18
    %s21 = sphi 0, %s19
    %s33 = sphi 0, %s35
    %s36 = sphi 0, %s33
    %s37 = sphi 0, %s36
    %s53 = sphi 0, %s37
    %s57 = sphi 0, %s57
    %s59 = sphi 0, %s57
    %s60 = sphi 0, %s59
    %s74 = sphi 0, %s60
    %s78 = sphi 0, %s78
    %s80 = sphi 0, %s78
    %s81 = sphi 0, %s80
    %s95 = sphi 0, %s81
    %s103 = sphi 0, %s105
    %s106 = sphi 0, %s103
    %s107 = sphi 0, %s106
    %s123 = sphi 0, %s107
  $region4: #{projection_forward.1} parent=0 // loop_header_branch
    %12 = sbr.rel (%p10) target = $region8
  $region5: #{projection_forward.1} parent=0 // loop_body
    %s14 = ssub.s32 %s9, 1
    %s15 = ssub.s32 %s9, 2
    %s22 = sadd.s32 1, %s17
    %p23 = scmp.ge.s32.totalorder %s22, 1
    %s24 = scalar_select %p23, 0, %s22
    %s25 = sadd.s32 1, %s16
    %s26 = scalar_select %p23, %s25, %s16
    %p27 = scmp.ge.s32.totalorder %s26, 2
    %s28 = scalar_select %p27, 0, %s26
    %s29 = ssub.s32 %s16, %s28
    %s30 = ssub.s32 %s17, %s24
    %s31 = sor.u32 %s29, %s30
    %p32 = scmp.eq.s32.totalorder %s31, 0
    %s34 = sadd.s32 %s33, 1
    %s35 = scalar_select %p32, %s33, %s34
    %p38 = pneg %p32
    %p39 = scmp.eq.s32.totalorder %s9, 1
    %p40 = por %p38, %p39
    %p41 = scmp.ne.s32.totalorder %s33, %s36
    %p42 = scmp.eq.s32.totalorder %s9, 0
    %p43 = por %p41, %p42
    %p44 = scmp.ne.s32.totalorder %s33, %s36
    %p45 = scmp.eq.s32.totalorder %s14, 1
    %p46 = por %p44, %p45
    %p47 = scmp.ne.s32.totalorder %s36, %s37
    %p48 = scmp.eq.s32.totalorder %s14, 0
    %p49 = por %p47, %p48
    %p50 = scmp.ne.s32.totalorder %s36, %s37
    %p51 = scmp.eq.s32.totalorder %s15, 1
    %p52 = por %p50, %p51
    %p54 = scmp.ne.s32.totalorder %s37, %s53
    %p55 = scmp.eq.s32.totalorder %s15, 0
    %p56 = por %p54, %p55
    %s58 = sadd.s32 %s57, 1
    %p61 = scmp.eq.s32.totalorder %s9, 1
    %p62 = scmp.ne.s32.totalorder %s57, %s59
    %p63 = scmp.eq.s32.totalorder %s9, 0
    %p64 = por %p62, %p63
    %p65 = scmp.ne.s32.totalorder %s57, %s59
    %p66 = scmp.eq.s32.totalorder %s14, 1
    %p67 = por %p65, %p66
    %p68 = scmp.ne.s32.totalorder %s59, %s60
    %p69 = scmp.eq.s32.totalorder %s14, 0
    %p70 = por %p68, %p69
    %p71 = scmp.ne.s32.totalorder %s59, %s60
    %p72 = scmp.eq.s32.totalorder %s15, 1
    %p73 = por %p71, %p72
    %p75 = scmp.ne.s32.totalorder %s60, %s74
    %p76 = scmp.eq.s32.totalorder %s15, 0
    %p77 = por %p75, %p76
    %s79 = sadd.s32 %s78, 1
    %p82 = scmp.eq.s32.totalorder %s9, 1
    %p83 = scmp.ne.s32.totalorder %s78, %s80
    %p84 = scmp.eq.s32.totalorder %s9, 0
    %p85 = por %p83, %p84
    %p86 = scmp.ne.s32.totalorder %s78, %s80
    %p87 = scmp.eq.s32.totalorder %s14, 1
    %p88 = por %p86, %p87
    %p89 = scmp.ne.s32.totalorder %s80, %s81
    %p90 = scmp.eq.s32.totalorder %s14, 0
    %p91 = por %p89, %p90
    %p92 = scmp.ne.s32.totalorder %s80, %s81
    %p93 = scmp.eq.s32.totalorder %s15, 1
    %p94 = por %p92, %p93
    %p96 = scmp.ne.s32.totalorder %s81, %s95
    %p97 = scmp.eq.s32.totalorder %s15, 0
    %p98 = por %p96, %p97
    %s99 = ssub.s32 %s16, %s28
    %s100 = ssub.s32 %s17, %s24
    %s101 = sor.u32 %s99, %s100
    %p102 = scmp.eq.s32.totalorder %s101, 0
    %s104 = sadd.s32 %s103, 1
    %s105 = scalar_select %p102, %s103, %s104
    %p108 = pneg %p102
    %p109 = scmp.eq.s32.totalorder %s9, 1
    %p110 = por %p108, %p109
    %p111 = scmp.ne.s32.totalorder %s103, %s106
    %p112 = scmp.eq.s32.totalorder %s9, 0
    %p113 = por %p111, %p112
    %p114 = scmp.ne.s32.totalorder %s103, %s106
    %p115 = scmp.eq.s32.totalorder %s14, 1
    %p116 = por %p114, %p115
    %p117 = scmp.ne.s32.totalorder %s106, %s107
    %p118 = scmp.eq.s32.totalorder %s14, 0
    %p119 = por %p117, %p118
    %p120 = scmp.ne.s32.totalorder %s106, %s107
    %p121 = scmp.eq.s32.totalorder %s15, 1
    %p122 = por %p120, %p121
    %p124 = scmp.ne.s32.totalorder %s107, %s123
    %p125 = scmp.eq.s32.totalorder %s15, 0
    %p126 = por %p124, %p125
    %p127 = scmp.le.s32.totalorder 1, %s9
    %p128 = scmp.lt.s32.totalorder %s9, 3
    %p129 = pnand %p127, %p128
    %p130 = pneg %p129
    // Predicated region
    $region9: #{projection_forward.1} parent=5 // pred_check
      _
    $region10: #{projection_forward.1} parent=5 // pred_check_branch
      %132 = sbr.rel (%p129) target = $region12
    $region11: #{projection_forward.1} parent=5 // pred_region
      %s133 = ssub.s32 %s9, 1
      // Predicated region
      $region13: #{projection_forward.1} parent=11 // pred_check
        %p134 = pneg %p70
      $region14: #{projection_forward.1} parent=11 // pred_check_branch
        %136 = sbr.rel (%p134) target = $region16
      $region15: #{projection_forward.1} parent=11 // pred_region
        _
      $region16: #{projection_forward.1} parent=11 // pred_fallthru
        _
      // Predicated region
      $region17: #{projection_forward.1} parent=11 // pred_check
        %p137 = pneg %p91
      $region18: #{projection_forward.1} parent=11 // pred_check_branch
        %139 = sbr.rel (%p137) target = $region20
      $region19: #{projection_forward.1} parent=11 // pred_region
        _
      $region20: #{projection_forward.1} parent=11 // pred_fallthru
        _
    $region12: #{projection_forward.1} parent=5 // pred_fallthru
      _
    %p140 = scmp.lt.s32.totalorder %s9, 2
    // Predicated region
    $region21: #{projection_forward.1} parent=5 // pred_check
      %p141 = pneg %p140
    $region22: #{projection_forward.1} parent=5 // pred_check_branch
      %143 = sbr.rel (%p141) target = $region24
    $region23: #{projection_forward.1} parent=5 // pred_region
      // Predicated region
      $region25: #{projection_forward.1} parent=23 // pred_check
        %p144 = pneg %p43
      $region26: #{projection_forward.1} parent=23 // pred_check_branch
        %146 = sbr.rel (%p144) target = $region28
      $region27: #{projection_forward.1} parent=23 // pred_region
        %s147 = smul.u32 4, %s16
        %s148 = smul.u32 2, %s17
        %p149 = scmp.lt.s32.totalorder %s147, 7
        %s150 = scalar_select %p149, %s147, 7
        %p151 = scmp.lt.s32.totalorder %s148, 1
        %s152 = scalar_select %p151, %s148, 1
        %s153 = smul.addr %s150, 4
        %s154 = sadd.s32 %s152, %s153
        %s155 = smul.addr %s154, 8
        %s156 = scalar_lea.vmem %s0, %s155
        %s157 = smul.u32 4, %s16
        %s158 = smul.u32 2, %s17
      $region28: #{projection_forward.1} parent=23 // pred_fallthru
        _
    $region24: #{projection_forward.1} parent=5 // pred_fallthru
      _
    %p159 = scmp.le.s32.totalorder 1, %s9
    %p160 = scmp.lt.s32.totalorder %s9, 3
    %p161 = pnand %p159, %p160
    %p162 = pneg %p161
    // Predicated region
    $region29: #{projection_forward.1} parent=5 // pred_check
      _
    $region30: #{projection_forward.1} parent=5 // pred_check_branch
      %164 = sbr.rel (%p161) target = $region32
    $region31: #{projection_forward.1} parent=5 // pred_region
      %s165 = ssub.s32 %s9, 1
      %s166 = smul.u32 4, %s18
      %s167 = smul.u32 2, %s19
      %p168 = scmp.lt.s32.totalorder %s166, 7
      %s169 = scalar_select %p168, %s166, 7
      %p170 = scmp.lt.s32.totalorder %s167, 1
      %s171 = scalar_select %p170, %s167, 1
      %s172 = smul.addr %s169, 4
      %s173 = sadd.s32 %s171, %s172
      %s174 = smul.addr %s173, 8
      %s175 = scalar_lea.vmem %s0, %s174
      %p176 = pneg %p49
      %p177 = pneg %p46
      %p178 = pneg %p70
      %p179 = pneg %p67
      %p180 = pneg %p91
      %p181 = pneg %p88
      %p182 = pneg %p119
      %p183 = pneg %p116
      %s184 = smul.u32 4, %s18
      %s185 = smul.u32 2, %s19
      %p186 = scmp.lt.s32.totalorder %s184, 7
      %s187 = scalar_select %p186, %s184, 7
      %p188 = scmp.lt.s32.totalorder %s185, 1
      %s189 = scalar_select %p188, %s185, 1
      %s190 = smul.addr %s187, 8
      %s191 = sadd.s32 %s189, %s190
      %s192 = smul.addr %s191, 8
      %s193 = scalar_lea.vmem %s3, %s192
      %s194 = smul.u32 4, %s18
      %s195 = smul.u32 2, %s19
      %p196 = scmp.lt.s32.totalorder %s194, 7
      %s197 = scalar_select %p196, %s194, 7
      %p198 = scmp.lt.s32.totalorder %s195, 1
      %s199 = scalar_select %p198, %s195, 1
      %s200 = smul.addr %s197, 4
      %s201 = sadd.s32 %s199, %s200
      %s202 = smul.addr %s201, 8
      %s203 = scalar_lea.vmem %s0, %s202
      %s204 = smul.u32 4, %s18
      %s205 = smul.u32 2, %s19
      %s206 = smul.u32 4, %s18
      %s207 = smul.u32 2, %s19
      %p208 = scmp.lt.s32.totalorder %s206, 7
      %s209 = scalar_select %p208, %s206, 7
      %p210 = scmp.lt.s32.totalorder %s207, 1
      %s211 = scalar_select %p210, %s207, 1
      %s212 = smul.addr %s209, 8
      %s213 = sadd.s32 %s211, %s212
      %s214 = smul.addr %s213, 8
      %s215 = scalar_lea.vmem %s3, %s214
      %s216 = smul.u32 4, %s18
      %s217 = smul.u32 2, %s19
      %v218 = vld [vmem:[%s1] sm:$0xff]
      %v219 = vld [vmem:[%s1 + $0x8] sm:$0xff]
      %v220 = vld [vmem:[%s1 + $0x10] sm:$0xff]
      %v221 = vld [vmem:[%s1 + $0x18] sm:$0xff]
      %v222 = vld [vmem:[%s2] sm:$0xff]
      %v223 = vld [vmem:[%s2 + $0x8] sm:$0xff]
      %v224 = vld [vmem:[%s2 + $0x10] sm:$0xff]
      %v225 = vld [vmem:[%s2 + $0x18] sm:$0xff]
      %v226 = vld [vmem:[%s203] sm:$0xff]
      %v227 = vld [vmem:[%s203 + $0x8] sm:$0xff]
      %v228 = vld [vmem:[%s203 + $0x10] sm:$0xff]
      %v229 = vld [vmem:[%s203 + $0x18] sm:$0xff]
      %231 = vset.pattern.permute.xlu0 0
      %232 = vperm.xlu0 %231, %v222
      %v233 = vpop.permute.xlu0 %232
      %236 = vset.pattern.permute.xlu0 0
      %237 = vperm.xlu0 %236, %v223
      %v238 = vpop.permute.xlu0 %237
      %241 = vset.pattern.permute.xlu0 0
      %242 = vperm.xlu0 %241, %v224
      %v243 = vpop.permute.xlu0 %242
      %246 = vset.pattern.permute.xlu0 0
      %247 = vperm.xlu0 %246, %v225
      %v248 = vpop.permute.xlu0 %247
      %vm250 = vcmask 130048
      %v252 = vsel %vm250, %v218, 0
      %v255 = vsel %vm250, %v219, 0
      %v258 = vsel %vm250, %v220, 0
      %v261 = vsel %vm250, %v221, 0
      %263 = vmatprep.subr.mxu0 0.0
      %264 = vmatpush1.msra.mxu0 0.0
      %265 = vmatprep.subr.mxu0 0.0
      %266 = vmatpush1.msra.mxu0 0.0
      %267 = vmatprep.subr.mxu0 0.0
      %268 = vmatpush1.msra.mxu0 0.0
      %269 = vmatprep.subr.mxu0 0.0
      %270 = vmatpush1.msra.mxu0 0.0
      %271 = vmatprep.subr.mxu0 0.0
      %272 = vmatpush1.msra.mxu0 0.0
      %273 = vmatprep.subr.mxu0 0.0
      %274 = vmatpush1.msra.mxu0 0.0
      %275 = vmatprep.subr.mxu0 0.0
      %276 = vmatpush1.msra.mxu0 0.0
      %277 = vmatprep.subr.mxu0 0.0
      %278 = vmatpush1.msra.mxu0 0.0
      %279 = vmatprep.subr.mxu0 0.0
      %280 = vmatpush1.msra.mxu0 0.0
      %281 = vmatprep.subr.mxu0 0.0
      %282 = vmatpush1.msra.mxu0 0.0
      %283 = vmatprep.subr.mxu0 0.0
      %284 = vmatpush1.msra.mxu0 0.0
      %285 = vmatprep.subr.mxu0 0.0
      %286 = vmatpush1.msra.mxu0 0.0
      %287 = vmatprep.subr.mxu0 0.0
      %288 = vmatpush1.msra.mxu0 0.0
      %289 = vmatprep.subr.mxu0 0.0
      %290 = vmatpush1.msra.mxu0 0.0
      %291 = vmatprep.subr.mxu0 %v229
      %292 = vmatpush1.msra.mxu0 %v228
      %293 = vmatprep.subr.mxu0 %v227
      %294 = vmatpush1.msra.mxu0 %v226
      %295 = vmatprep.subr.mxu0 0.0
      %296 = vmatpush2.msra.mxu0 0.0
      %297 = vmatprep.subr.mxu0 0.0
      %298 = vmatpush2.msra.mxu0 0.0
      %299 = vmatprep.subr.mxu0 0.0
      %300 = vmatpush2.msra.mxu0 0.0
      %301 = vmatprep.subr.mxu0 0.0
      %302 = vmatpush2.msra.mxu0 0.0
      %303 = vmatprep.subr.mxu0 0.0
      %304 = vmatpush2.msra.mxu0 0.0
      %305 = vmatprep.subr.mxu0 0.0
      %306 = vmatpush2.msra.mxu0 0.0
      %307 = vmatprep.subr.mxu0 0.0
      %308 = vmatpush2.msra.mxu0 0.0
      %309 = vmatprep.subr.mxu0 0.0
      %310 = vmatpush2.msra.mxu0 0.0
      %311 = vmatprep.subr.mxu0 0.0
      %312 = vmatpush2.msra.mxu0 0.0
      %313 = vmatprep.subr.mxu0 0.0
      %314 = vmatpush2.msra.mxu0 0.0
      %315 = vmatprep.subr.mxu0 0.0
      %316 = vmatpush2.msra.mxu0 0.0
      %317 = vmatprep.subr.mxu0 0.0
      %318 = vmatpush2.msra.mxu0 0.0
      %319 = vmatprep.subr.mxu0 0.0
      %320 = vmatpush2.msra.mxu0 0.0
      %321 = vmatprep.subr.mxu0 0.0
      %322 = vmatpush2.msra.mxu0 0.0
      %323 = vmatprep.subr.mxu0 0.0
      %324 = vmatpush2.msra.mxu0 0.0
      %325 = vmatprep.subr.mxu0 0.0
      %326 = vmatpush2.msra.mxu0 0.0
      %327 = vmatprep.mubr.f32.mxu0 0.0
      %328 = vmatmul.mubr.f32.gmra.mxu0 %v252
      %v329 = vpop.f32.mrf.mxu0
      %v330 = vadd.f32 %v233, %v329
      %v331 = vpop.f32.mrf.mxu0
      %v332 = vadd.f32 %v233, %v331
      %333 = vmatprep.mubr.f32.mxu0 0.0
      %334 = vmatmul.mubr.f32.gmra.mxu0 %v255
      %v335 = vpop.f32.mrf.mxu0
      %v336 = vadd.f32 %v238, %v335
      %v337 = vpop.f32.mrf.mxu0
      %v338 = vadd.f32 %v238, %v337
      %339 = vmatprep.mubr.f32.mxu0 0.0
      %340 = vmatmul.mubr.f32.gmra.mxu0 %v258
      %v341 = vpop.f32.mrf.mxu0
      %v342 = vadd.f32 %v243, %v341
      %v343 = vpop.f32.mrf.mxu0
      %v344 = vadd.f32 %v243, %v343
      %345 = vmatprep.mubr.f32.mxu0 0.0
      %346 = vmatmul.mubr.f32.gmra.mxu0 %v261
      %v347 = vpop.f32.mrf.mxu0
      %v348 = vadd.f32 %v248, %v347
      %v349 = vpop.f32.mrf.mxu0
      %v350 = vadd.f32 %v248, %v349
      %351 = vdwg.mxu0
      %352 = vst [vmem:[%s215] sm:$0xff] %v330
      %353 = vst [vmem:[%s215 + $0x8] sm:$0xff] %v332
      %354 = vst [vmem:[%s215 + $0x10] sm:$0xff] %v336
      %355 = vst [vmem:[%s215 + $0x18] sm:$0xff] %v338
      %356 = vst [vmem:[%s215 + $0x20] sm:$0xff] %v342
      %357 = vst [vmem:[%s215 + $0x28] sm:$0xff] %v344
      %358 = vst [vmem:[%s215 + $0x30] sm:$0xff] %v348
      %359 = vst [vmem:[%s215 + $0x38] sm:$0xff] %v350
      %s360 = scalar_lea.vmem %s203, 32
      %v361 = vld [vmem:[%s360] sm:$0xff]
      %v362 = vld [vmem:[%s360 + $0x8] sm:$0xff]
      %v363 = vld [vmem:[%s360 + $0x10] sm:$0xff]
      %v364 = vld [vmem:[%s360 + $0x18] sm:$0xff]
      %365 = vmatprep.subr.mxu0 0.0
      %366 = vmatpush1.msra.mxu0 0.0
      %367 = vmatprep.subr.mxu0 0.0
      %368 = vmatpush1.msra.mxu0 0.0
      %369 = vmatprep.subr.mxu0 0.0
      %370 = vmatpush1.msra.mxu0 0.0
      %371 = vmatprep.subr.mxu0 0.0
      %372 = vmatpush1.msra.mxu0 0.0
      %373 = vmatprep.subr.mxu0 0.0
      %374 = vmatpush1.msra.mxu0 0.0
      %375 = vmatprep.subr.mxu0 0.0
      %376 = vmatpush1.msra.mxu0 0.0
      %377 = vmatprep.subr.mxu0 0.0
      %378 = vmatpush1.msra.mxu0 0.0
      %379 = vmatprep.subr.mxu0 0.0
      %380 = vmatpush1.msra.mxu0 0.0
      %381 = vmatprep.subr.mxu0 0.0
      %382 = vmatpush1.msra.mxu0 0.0
      %383 = vmatprep.subr.mxu0 0.0
      %384 = vmatpush1.msra.mxu0 0.0
      %385 = vmatprep.subr.mxu0 0.0
      %386 = vmatpush1.msra.mxu0 0.0
      %387 = vmatprep.subr.mxu0 0.0
      %388 = vmatpush1.msra.mxu0 0.0
      %389 = vmatprep.subr.mxu0 0.0
      %390 = vmatpush1.msra.mxu0 0.0
      %391 = vmatprep.subr.mxu0 0.0
      %392 = vmatpush1.msra.mxu0 0.0
      %393 = vmatprep.subr.mxu0 %v364
      %394 = vmatpush1.msra.mxu0 %v363
      %395 = vmatprep.subr.mxu0 %v362
      %396 = vmatpush1.msra.mxu0 %v361
      %397 = vmatprep.subr.mxu0 0.0
      %398 = vmatpush2.msra.mxu0 0.0
      %399 = vmatprep.subr.mxu0 0.0
      %400 = vmatpush2.msra.mxu0 0.0
      %401 = vmatprep.subr.mxu0 0.0
      %402 = vmatpush2.msra.mxu0 0.0
      %403 = vmatprep.subr.mxu0 0.0
      %404 = vmatpush2.msra.mxu0 0.0
      %405 = vmatprep.subr.mxu0 0.0
      %406 = vmatpush2.msra.mxu0 0.0
      %407 = vmatprep.subr.mxu0 0.0
      %408 = vmatpush2.msra.mxu0 0.0
      %409 = vmatprep.subr.mxu0 0.0
      %410 = vmatpush2.msra.mxu0 0.0
      %411 = vmatprep.subr.mxu0 0.0
      %412 = vmatpush2.msra.mxu0 0.0
      %413 = vmatprep.subr.mxu0 0.0
      %414 = vmatpush2.msra.mxu0 0.0
      %415 = vmatprep.subr.mxu0 0.0
      %416 = vmatpush2.msra.mxu0 0.0
      %417 = vmatprep.subr.mxu0 0.0
      %418 = vmatpush2.msra.mxu0 0.0
      %419 = vmatprep.subr.mxu0 0.0
      %420 = vmatpush2.msra.mxu0 0.0
      %421 = vmatprep.subr.mxu0 0.0
      %422 = vmatpush2.msra.mxu0 0.0
      %423 = vmatprep.subr.mxu0 0.0
      %424 = vmatpush2.msra.mxu0 0.0
      %425 = vmatprep.subr.mxu0 0.0
      %426 = vmatpush2.msra.mxu0 0.0
      %427 = vmatprep.subr.mxu0 0.0
      %428 = vmatpush2.msra.mxu0 0.0
      %429 = vmatprep.mubr.f32.mxu0 0.0
      %430 = vmatmul.mubr.f32.gmra.mxu0 %v252
      %v431 = vpop.f32.mrf.mxu0
      %v432 = vadd.f32 %v233, %v431
      %v433 = vpop.f32.mrf.mxu0
      %v434 = vadd.f32 %v233, %v433
      %435 = vmatprep.mubr.f32.mxu0 0.0
      %436 = vmatmul.mubr.f32.gmra.mxu0 %v255
      %v437 = vpop.f32.mrf.mxu0
      %v438 = vadd.f32 %v238, %v437
      %v439 = vpop.f32.mrf.mxu0
      %v440 = vadd.f32 %v238, %v439
      %441 = vmatprep.mubr.f32.mxu0 0.0
      %442 = vmatmul.mubr.f32.gmra.mxu0 %v258
      %v443 = vpop.f32.mrf.mxu0
      %v444 = vadd.f32 %v243, %v443
      %v445 = vpop.f32.mrf.mxu0
      %v446 = vadd.f32 %v243, %v445
      %447 = vmatprep.mubr.f32.mxu0 0.0
      %448 = vmatmul.mubr.f32.gmra.mxu0 %v261
      %v449 = vpop.f32.mrf.mxu0
      %v450 = vadd.f32 %v248, %v449
      %v451 = vpop.f32.mrf.mxu0
      %v452 = vadd.f32 %v248, %v451
      %453 = vdwg.mxu0
      %s454 = scalar_lea.vmem %s215, 64
      %455 = vst [vmem:[%s454] sm:$0xff] %v432
      %456 = vst [vmem:[%s454 + $0x8] sm:$0xff] %v434
      %457 = vst [vmem:[%s454 + $0x10] sm:$0xff] %v438
      %458 = vst [vmem:[%s454 + $0x18] sm:$0xff] %v440
      %459 = vst [vmem:[%s454 + $0x20] sm:$0xff] %v444
      %460 = vst [vmem:[%s454 + $0x28] sm:$0xff] %v446
      %461 = vst [vmem:[%s454 + $0x30] sm:$0xff] %v450
      %462 = vst [vmem:[%s454 + $0x38] sm:$0xff] %v452
      %s463 = scalar_lea.vmem %s203, 64
      %v464 = vld [vmem:[%s463] sm:$0xff]
      %v465 = vld [vmem:[%s463 + $0x8] sm:$0xff]
      %v466 = vld [vmem:[%s463 + $0x10] sm:$0xff]
      %v467 = vld [vmem:[%s463 + $0x18] sm:$0xff]
      %468 = vmatprep.subr.mxu0 0.0
      %469 = vmatpush1.msra.mxu0 0.0
      %470 = vmatprep.subr.mxu0 0.0
      %471 = vmatpush1.msra.mxu0 0.0
      %472 = vmatprep.subr.mxu0 0.0
      %473 = vmatpush1.msra.mxu0 0.0
      %474 = vmatprep.subr.mxu0 0.0
      %475 = vmatpush1.msra.mxu0 0.0
      %476 = vmatprep.subr.mxu0 0.0
      %477 = vmatpush1.msra.mxu0 0.0
      %478 = vmatprep.subr.mxu0 0.0
      %479 = vmatpush1.msra.mxu0 0.0
      %480 = vmatprep.subr.mxu0 0.0
      %481 = vmatpush1.msra.mxu0 0.0
      %482 = vmatprep.subr.mxu0 0.0
      %483 = vmatpush1.msra.mxu0 0.0
      %484 = vmatprep.subr.mxu0 0.0
      %485 = vmatpush1.msra.mxu0 0.0
      %486 = vmatprep.subr.mxu0 0.0
      %487 = vmatpush1.msra.mxu0 0.0
      %488 = vmatprep.subr.mxu0 0.0
      %489 = vmatpush1.msra.mxu0 0.0
      %490 = vmatprep.subr.mxu0 0.0
      %491 = vmatpush1.msra.mxu0 0.0
      %492 = vmatprep.subr.mxu0 0.0
      %493 = vmatpush1.msra.mxu0 0.0
      %494 = vmatprep.subr.mxu0 0.0
      %495 = vmatpush1.msra.mxu0 0.0
      %496 = vmatprep.subr.mxu0 %v467
      %497 = vmatpush1.msra.mxu0 %v466
      %498 = vmatprep.subr.mxu0 %v465
      %499 = vmatpush1.msra.mxu0 %v464
      %500 = vmatprep.subr.mxu0 0.0
      %501 = vmatpush2.msra.mxu0 0.0
      %502 = vmatprep.subr.mxu0 0.0
      %503 = vmatpush2.msra.mxu0 0.0
      %504 = vmatprep.subr.mxu0 0.0
      %505 = vmatpush2.msra.mxu0 0.0
      %506 = vmatprep.subr.mxu0 0.0
      %507 = vmatpush2.msra.mxu0 0.0
      %508 = vmatprep.subr.mxu0 0.0
      %509 = vmatpush2.msra.mxu0 0.0
      %510 = vmatprep.subr.mxu0 0.0
      %511 = vmatpush2.msra.mxu0 0.0
      %512 = vmatprep.subr.mxu0 0.0
      %513 = vmatpush2.msra.mxu0 0.0
      %514 = vmatprep.subr.mxu0 0.0
      %515 = vmatpush2.msra.mxu0 0.0
      %516 = vmatprep.subr.mxu0 0.0
      %517 = vmatpush2.msra.mxu0 0.0
      %518 = vmatprep.subr.mxu0 0.0
      %519 = vmatpush2.msra.mxu0 0.0
      %520 = vmatprep.subr.mxu0 0.0
      %521 = vmatpush2.msra.mxu0 0.0
      %522 = vmatprep.subr.mxu0 0.0
      %523 = vmatpush2.msra.mxu0 0.0
      %524 = vmatprep.subr.mxu0 0.0
      %525 = vmatpush2.msra.mxu0 0.0
      %526 = vmatprep.subr.mxu0 0.0
      %527 = vmatpush2.msra.mxu0 0.0
      %528 = vmatprep.subr.mxu0 0.0
      %529 = vmatpush2.msra.mxu0 0.0
      %530 = vmatprep.subr.mxu0 0.0
      %531 = vmatpush2.msra.mxu0 0.0
      %532 = vmatprep.mubr.f32.mxu0 0.0
      %533 = vmatmul.mubr.f32.gmra.mxu0 %v252
      %v534 = vpop.f32.mrf.mxu0
      %v535 = vadd.f32 %v233, %v534
      %v536 = vpop.f32.mrf.mxu0
      %v537 = vadd.f32 %v233, %v536
      %538 = vmatprep.mubr.f32.mxu0 0.0
      %539 = vmatmul.mubr.f32.gmra.mxu0 %v255
      %v540 = vpop.f32.mrf.mxu0
      %v541 = vadd.f32 %v238, %v540
      %v542 = vpop.f32.mrf.mxu0
      %v543 = vadd.f32 %v238, %v542
      %544 = vmatprep.mubr.f32.mxu0 0.0
      %545 = vmatmul.mubr.f32.gmra.mxu0 %v258
      %v546 = vpop.f32.mrf.mxu0
      %v547 = vadd.f32 %v243, %v546
      %v548 = vpop.f32.mrf.mxu0
      %v549 = vadd.f32 %v243, %v548
      %550 = vmatprep.mubr.f32.mxu0 0.0
      %551 = vmatmul.mubr.f32.gmra.mxu0 %v261
      %v552 = vpop.f32.mrf.mxu0
      %v553 = vadd.f32 %v248, %v552
      %v554 = vpop.f32.mrf.mxu0
      %v555 = vadd.f32 %v248, %v554
      %556 = vdwg.mxu0
      %s557 = scalar_lea.vmem %s215, 128
      %558 = vst [vmem:[%s557] sm:$0xff] %v535
      %559 = vst [vmem:[%s557 + $0x8] sm:$0xff] %v537
      %560 = vst [vmem:[%s557 + $0x10] sm:$0xff] %v541
      %561 = vst [vmem:[%s557 + $0x18] sm:$0xff] %v543
      %562 = vst [vmem:[%s557 + $0x20] sm:$0xff] %v547
      %563 = vst [vmem:[%s557 + $0x28] sm:$0xff] %v549
      %564 = vst [vmem:[%s557 + $0x30] sm:$0xff] %v553
      %565 = vst [vmem:[%s557 + $0x38] sm:$0xff] %v555
      %s566 = scalar_lea.vmem %s203, 96
      %v567 = vld [vmem:[%s566] sm:$0xff]
      %v568 = vld [vmem:[%s566 + $0x8] sm:$0xff]
      %v569 = vld [vmem:[%s566 + $0x10] sm:$0xff]
      %v570 = vld [vmem:[%s566 + $0x18] sm:$0xff]
      %571 = vmatprep.subr.mxu0 0.0
      %572 = vmatpush1.msra.mxu0 0.0
      %573 = vmatprep.subr.mxu0 0.0
      %574 = vmatpush1.msra.mxu0 0.0
      %575 = vmatprep.subr.mxu0 0.0
      %576 = vmatpush1.msra.mxu0 0.0
      %577 = vmatprep.subr.mxu0 0.0
      %578 = vmatpush1.msra.mxu0 0.0
      %579 = vmatprep.subr.mxu0 0.0
      %580 = vmatpush1.msra.mxu0 0.0
      %581 = vmatprep.subr.mxu0 0.0
      %582 = vmatpush1.msra.mxu0 0.0
      %583 = vmatprep.subr.mxu0 0.0
      %584 = vmatpush1.msra.mxu0 0.0
      %585 = vmatprep.subr.mxu0 0.0
      %586 = vmatpush1.msra.mxu0 0.0
      %587 = vmatprep.subr.mxu0 0.0
      %588 = vmatpush1.msra.mxu0 0.0
      %589 = vmatprep.subr.mxu0 0.0
      %590 = vmatpush1.msra.mxu0 0.0
      %591 = vmatprep.subr.mxu0 0.0
      %592 = vmatpush1.msra.mxu0 0.0
      %593 = vmatprep.subr.mxu0 0.0
      %594 = vmatpush1.msra.mxu0 0.0
      %595 = vmatprep.subr.mxu0 0.0
      %596 = vmatpush1.msra.mxu0 0.0
      %597 = vmatprep.subr.mxu0 0.0
      %598 = vmatpush1.msra.mxu0 0.0
      %599 = vmatprep.subr.mxu0 %v570
      %600 = vmatpush1.msra.mxu0 %v569
      %601 = vmatprep.subr.mxu0 %v568
      %602 = vmatpush1.msra.mxu0 %v567
      %603 = vmatprep.subr.mxu0 0.0
      %604 = vmatpush2.msra.mxu0 0.0
      %605 = vmatprep.subr.mxu0 0.0
      %606 = vmatpush2.msra.mxu0 0.0
      %607 = vmatprep.subr.mxu0 0.0
      %608 = vmatpush2.msra.mxu0 0.0
      %609 = vmatprep.subr.mxu0 0.0
      %610 = vmatpush2.msra.mxu0 0.0
      %611 = vmatprep.subr.mxu0 0.0
      %612 = vmatpush2.msra.mxu0 0.0
      %613 = vmatprep.subr.mxu0 0.0
      %614 = vmatpush2.msra.mxu0 0.0
      %615 = vmatprep.subr.mxu0 0.0
      %616 = vmatpush2.msra.mxu0 0.0
      %617 = vmatprep.subr.mxu0 0.0
      %618 = vmatpush2.msra.mxu0 0.0
      %619 = vmatprep.subr.mxu0 0.0
      %620 = vmatpush2.msra.mxu0 0.0
      %621 = vmatprep.subr.mxu0 0.0
      %622 = vmatpush2.msra.mxu0 0.0
      %623 = vmatprep.subr.mxu0 0.0
      %624 = vmatpush2.msra.mxu0 0.0
      %625 = vmatprep.subr.mxu0 0.0
      %626 = vmatpush2.msra.mxu0 0.0
      %627 = vmatprep.subr.mxu0 0.0
      %628 = vmatpush2.msra.mxu0 0.0
      %629 = vmatprep.subr.mxu0 0.0
      %630 = vmatpush2.msra.mxu0 0.0
      %631 = vmatprep.subr.mxu0 0.0
      %632 = vmatpush2.msra.mxu0 0.0
      %633 = vmatprep.subr.mxu0 0.0
      %634 = vmatpush2.msra.mxu0 0.0
      %635 = vmatprep.mubr.f32.mxu0 0.0
      %636 = vmatmul.mubr.f32.gmra.mxu0 %v252
      %v637 = vpop.f32.mrf.mxu0
      %v638 = vadd.f32 %v233, %v637
      %v639 = vpop.f32.mrf.mxu0
      %v640 = vadd.f32 %v233, %v639
      %641 = vmatprep.mubr.f32.mxu0 0.0
      %642 = vmatmul.mubr.f32.gmra.mxu0 %v255
      %v643 = vpop.f32.mrf.mxu0
      %v644 = vadd.f32 %v238, %v643
      %v645 = vpop.f32.mrf.mxu0
      %v646 = vadd.f32 %v238, %v645
      %647 = vmatprep.mubr.f32.mxu0 0.0
      %648 = vmatmul.mubr.f32.gmra.mxu0 %v258
      %v649 = vpop.f32.mrf.mxu0
      %v650 = vadd.f32 %v243, %v649
      %v651 = vpop.f32.mrf.mxu0
      %v652 = vadd.f32 %v243, %v651
      %653 = vmatprep.mubr.f32.mxu0 0.0
      %654 = vmatmul.mubr.f32.gmra.mxu0 %v261
      %v655 = vpop.f32.mrf.mxu0
      %v656 = vadd.f32 %v248, %v655
      %v657 = vpop.f32.mrf.mxu0
      %v658 = vadd.f32 %v248, %v657
      %659 = vdwg.mxu0
      %s660 = scalar_lea.vmem %s215, 192
      %661 = vst [vmem:[%s660] sm:$0xff] %v638
      %662 = vst [vmem:[%s660 + $0x8] sm:$0xff] %v640
      %663 = vst [vmem:[%s660 + $0x10] sm:$0xff] %v644
      %664 = vst [vmem:[%s660 + $0x18] sm:$0xff] %v646
      %665 = vst [vmem:[%s660 + $0x20] sm:$0xff] %v650
      %666 = vst [vmem:[%s660 + $0x28] sm:$0xff] %v652
      %667 = vst [vmem:[%s660 + $0x30] sm:$0xff] %v656
      %668 = vst [vmem:[%s660 + $0x38] sm:$0xff] %v658
      %s669 = smul.u32 4, %s18
      %s670 = smul.u32 2, %s19
      %p671 = scmp.lt.s32.totalorder %s669, 7
      %s672 = scalar_select %p671, %s669, 7
      %p673 = scmp.lt.s32.totalorder %s670, 1
      %s674 = scalar_select %p673, %s670, 1
      %s675 = smul.addr %s672, 8
      %s676 = sadd.s32 %s674, %s675
      %s677 = smul.addr %s676, 8
      %s678 = scalar_lea.vmem %s3, %s677
      // Predicated region
      $region33: #{projection_forward.1} parent=31 // pred_check
        %p679 = pneg %p116
      $region34: #{projection_forward.1} parent=31 // pred_check_branch
        %681 = sbr.rel (%p679) target = $region36
      $region35: #{projection_forward.1} parent=31 // pred_region
        %s682 = smul.u32 4, %s18
        %s683 = smul.u32 2, %s19
      $region36: #{projection_forward.1} parent=31 // pred_fallthru
        _
    $region32: #{projection_forward.1} parent=5 // pred_fallthru
      _
    %p684 = scmp.le.s32.totalorder 2, %s9
    // Predicated region
    $region37: #{projection_forward.1} parent=5 // pred_check
      %p685 = pneg %p684
    $region38: #{projection_forward.1} parent=5 // pred_check_branch
      %687 = sbr.rel (%p685) target = $region40
    $region39: #{projection_forward.1} parent=5 // pred_region
      %s688 = ssub.s32 %s9, 2
      // Predicated region
      $region41: #{projection_forward.1} parent=39 // pred_check
        %p689 = pneg %p122
      $region42: #{projection_forward.1} parent=39 // pred_check_branch
        %691 = sbr.rel (%p689) target = $region44
      $region43: #{projection_forward.1} parent=39 // pred_region
        %s692 = smul.u32 4, %s20
        %s693 = smul.u32 2, %s21
        %p694 = scmp.lt.s32.totalorder %s692, 7
        %s695 = scalar_select %p694, %s692, 7
        %p696 = scmp.lt.s32.totalorder %s693, 1
        %s697 = scalar_select %p696, %s693, 1
        %s698 = smul.addr %s695, 8
        %s699 = sadd.s32 %s697, %s698
        %s700 = smul.addr %s699, 8
        %s701 = scalar_lea.vmem %s3, %s700
      $region44: #{projection_forward.1} parent=39 // pred_fallthru
        _
    $region40: #{projection_forward.1} parent=5 // pred_fallthru
      _
  $region6: #{projection_forward.1} parent=0 // loop_footer
    %s13 = sadd.s32 1, %s9
  $region7: #{projection_forward.1} parent=0 // loop_footer_branch
    %8 = sbr.rel target = $region3
  $region8: #{projection_forward.1} parent=0 // loop_exit
    _

</llo_original>
